<compile_context>
chip_gen: v5e
topology: v5e:2x2
jax: 0.10.0
libtpu: 0.0.40
codegen_flags: <defaults>
</compile_context>

<pallas_src>
import jax
import jax.numpy as jnp
import numpy as np
from jax.experimental import pallas as pl
from jax.experimental.pallas import tpu as pltpu


def _round_up(x, m):
    return (x + m - 1) // m * m


def skipgram_kernel(x_ref, w_ref, b_ref, out_ref, m_ref, l_ref):
    vj = pl.program_id(1)
    tv = w_ref.shape[-1]

    @pl.when(vj == 0)
    def _init():
        m_ref[...] = jnp.full(m_ref.shape, -1e30, dtype=m_ref.dtype)
        l_ref[...] = jnp.zeros(l_ref.shape, dtype=l_ref.dtype)

    # (TB, E) @ (E, TV) on the MXU, f32 accumulation; bias added in f32.
    s = jnp.dot(x_ref[...], w_ref[...], preferred_element_type=jnp.float32)
    s = s + b_ref[...]                                    # (TB, TV) + (1, TV)

    # Online log-sum-exp over the vocab axis (exp/log on EUP, reduces on XLU).
    m_prev = m_ref[...]
    m_new = jnp.maximum(m_prev, jnp.max(s, axis=-1, keepdims=True))
    l_ref[...] = l_ref[...] * jnp.exp(m_prev - m_new) + jnp.sum(
        jnp.exp(s - m_new), axis=-1, keepdims=True)
    m_ref[...] = m_new

    # Stash the raw scores tile in the resident (TB, Vp) output block.
    col0 = pl.multiple_of(vj * tv, tv)
    out_ref[:, pl.ds(col0, tv)] = s

    # Last vocab step: normalize the whole row block with the global LSE.
    @pl.when(vj == pl.num_programs(1) - 1)
    def _finalize():
        lse = m_ref[...] + jnp.log(l_ref[...])            # (TB, 1)
        out_ref[...] = out_ref[...] - lse


def prepare_skipgram_weights(linear_w, linear_b, *, tv=1024):
    """One-time weight prep (transpose, bf16 cast, vocab pad).

    Do this at init / param-update time, NOT inside the per-call forward —
    the kernel is weight-DMA bound and the extra HBM pass would dominate.

    Returns (w_t [E, Vp] bf16, bias [1, Vp] f32, tv, n_vocab).
    """
    V, E = int(linear_w.shape[0]), int(linear_w.shape[1])
    # Lane-dense vocab tile (multiple of 128), capped at the padded vocab so
    # small vocabularies are a single grid step.
    vp_min = _round_up(V, 128)
    tv = max(128, _round_up(min(tv, vp_min), 128))
    vp = _round_up(V, tv)

    w_t = linear_w.T.astype(jnp.bfloat16)                  # (E, V)
    b2 = linear_b.reshape(1, V).astype(jnp.float32)        # (1, V)
    if vp != V:
        w_t = jnp.pad(w_t, ((0, 0), (0, vp - V)))
        # Padded columns get a very negative bias so they vanish in the LSE.
        b2 = jnp.pad(b2, ((0, 0), (0, vp - V)), constant_values=-1e30)
    return w_t, b2, tv, V


def skipgram_forward_prepared(ids, embed_table, w_t, b2, tv, n_vocab, *,
                              tb_cap=128):
    """Hot path: log_softmax(embed(ids) @ W^T + b, axis=1) with prepared W/b.

    ids:         [B]     int32
    embed_table: [V, E]  f32
    w_t:         [E, Vp] bf16   (from prepare_skipgram_weights)
    b2:          [1, Vp] f32
    returns:     [B, V]  f32 log-probabilities
    """
    B = int(ids.shape[0])
    E = int(embed_table.shape[1])
    vp = int(w_t.shape[1])
    assert vp % tv == 0

    # Hoisted embedding gather; bf16 activations for the MXU.
    x = embed_table[ids].astype(jnp.bfloat16)              # (B, E)

    # Batch tile: multiple of 16 (bf16 sublane packing), capped at tb_cap.
    # tb_cap: 128 default; 256 on v6e for large B; 64 on v7x if VMEM-tight.
    tb = min(tb_cap, _round_up(B, 16))
    bp = _round_up(B, tb)
    if bp != B:
        x = jnp.pad(x, ((0, bp - B), (0, 0)))

    grid = (bp // tb, vp // tv)

    # VMEM budget: resident (tb, vp) f32 output (x2 buffers), streamed weight
    # tiles (x2), x tile (x2), bias tile, scratch; plus headroom.
    vmem_bytes = (2 * tb * vp * 4          # output block(s)
                  + 2 * E * tv * 2         # weight stream
                  + 2 * tb * E * 2         # activations
                  + 2 * tv * 4             # bias
                  + 2 * tb * 4 * 2)        # m/l scratch
    vmem_limit = int(min(max(vmem_bytes + (4 << 20), 32 << 20), 100 << 20))

    cost = pl.CostEstimate(
        flops=2 * bp * E * vp,
        transcendentals=bp * vp,
        bytes_accessed=E * vp * 2 + bp * vp * 4 + bp * E * 2 + vp * 4,
    )

    out = pl.pallas_call(
        skipgram_kernel,
        out_shape=jax.ShapeDtypeStruct((bp, vp), jnp.float32),
        grid_spec=pltpu.PrefetchScalarGridSpec(
            num_scalar_prefetch=0,
            grid=grid,
            in_specs=[
                # gathered embeddings: one (tb, E) block per batch step,
                # resident across the vocab axis
                pl.BlockSpec((tb, E), lambda bi, vj: (bi, 0)),
                # output-projection weight, streamed (E, tv) tiles over vocab
                pl.BlockSpec((E, tv), lambda bi, vj: (0, vj)),
                # bias tile
                pl.BlockSpec((1, tv), lambda bi, vj: (0, vj)),
            ],
            # output row-block stays resident across the vocab axis (index map
            # constant in vj) and is normalized in place at the last vocab step
            out_specs=pl.BlockSpec((tb, vp), lambda bi, vj: (bi, 0)),
            scratch_shapes=[
                pltpu.VMEM((tb, 1), jnp.float32),   # running max
                pltpu.VMEM((tb, 1), jnp.float32),   # running sum-exp
            ],
        ),
        compiler_params=pltpu.CompilerParams(
            dimension_semantics=("parallel", "arbitrary"),
            vmem_limit_bytes=vmem_limit,
        ),
        cost_estimate=cost,
    )(x, w_t, b2)

    return out[:B, :n_vocab]


def skipgram_forward(ids, embed_table, linear_w, linear_b, *, tv=1024,
                     tb_cap=128):
    """Convenience wrapper (prep + forward). Prefer prepare_skipgram_weights
    once at init + skipgram_forward_prepared in the training/inference loop."""
    w_t, b2, tv, n_vocab = prepare_skipgram_weights(linear_w, linear_b, tv=tv)
    return skipgram_forward_prepared(ids, embed_table, w_t, b2, tv, n_vocab,
                                     tb_cap=tb_cap)


if __name__ == "__main__":
    # Small SkipGram config: nn.Embedding(n_vocab, n_embed), nn.Linear(n_embed, n_vocab)
    n_vocab, n_embed, batch = 512, 128, 8

    key = jax.random.PRNGKey(0)
    k_emb, k_w, k_b, k_ids = jax.random.split(key, 4)

    embed_table = jax.random.normal(k_emb, (n_vocab, n_embed), jnp.float32) * 0.1
    linear_w = jax.random.normal(k_w, (n_vocab, n_embed), jnp.float32) * 0.1
    linear_b = jax.random.normal(k_b, (n_vocab,), jnp.float32) * 0.1
    ids = jax.random.randint(k_ids, (batch,), 0, n_vocab, dtype=jnp.int32)

    # Reference (plain JAX, full f32); tolerance covers the bf16 cast of the
    # embeddings/weights inside the kernel path.
    ref = jax.nn.log_softmax(embed_table[ids] @ linear_w.T + linear_b, axis=1)

    # Default tv=1024 -> capped at vp=512 -> grid (1, 1): single-step path
    # with prepared (cached) weights, as in a real training loop.
    w_t, b2, tv_eff, v_eff = prepare_skipgram_weights(linear_w, linear_b)
    out = skipgram_forward_prepared(ids, embed_table, w_t, b2, tv_eff, v_eff)
    out = jax.block_until_ready(out)
    np.testing.assert_allclose(np.asarray(out), np.asarray(ref),
                               rtol=5e-3, atol=5e-3)

    # tv=256 -> grid (1, 2): exercises the online log-softmax across vocab tiles.
    out2 = skipgram_forward(ids, embed_table, linear_w, linear_b, tv=256)
    out2 = jax.block_until_ready(out2)
    np.testing.assert_allclose(np.asarray(out2), np.asarray(ref),
                               rtol=5e-3, atol=5e-3)

    print("KERNEL_OK")
</pallas_src>

<mosaic_0001>
module attributes {stable_mosaic.version = 11 : i64} {
  func.func @skipgram_kernel(%arg0: i32, %arg1: i32, %arg2: memref<16x128xbf16, #tpu.memory_space<vmem>>, %arg3: memref<128x512xbf16, #tpu.memory_space<vmem>>, %arg4: memref<1x512xf32, #tpu.memory_space<vmem>>, %arg5: memref<16x512xf32, #tpu.memory_space<vmem>>, %arg6: memref<16x1xf32, #tpu.memory_space<vmem>>, %arg7: memref<16x1xf32, #tpu.memory_space<vmem>>) attributes {dimension_semantics = [#tpu.dimension_semantics<parallel>, #tpu.dimension_semantics<arbitrary>], iteration_bounds = array<i64: 1, 1>, scalar_prefetch = 0 : i64, scratch_operands = 2 : i64, tpu.core_type = #tpu.core_type<tc>, window_params = [{transform_indices = @transform_0, window_bounds = array<i64: 16, 128>}, {transform_indices = @transform_1, window_bounds = array<i64: 128, 512>}, {transform_indices = @transform_2, window_bounds = array<i64: 1, 512>}, {transform_indices = @transform_3, window_bounds = array<i64: 16, 512>}]} {
    %c0_i32 = arith.constant 0 : i32
    %0 = arith.cmpi eq, %arg1, %c0_i32 : i32
    %1 = arith.extui %0 : i1 to i32
    %c0_i32_0 = arith.constant 0 : i32
    %2 = arith.cmpi ne, %1, %c0_i32_0 : i32
    scf.if %2 {
      %cst_19 = arith.constant -1.000000e+30 : f32
      %32 = vector.broadcast %cst_19 : f32 to vector<16x1xf32>
      %c0_20 = arith.constant 0 : index
      %c0_21 = arith.constant 0 : index
      %33 = vector.load %arg6[%c0_20, %c0_21] : memref<16x1xf32, #tpu.memory_space<vmem>>, vector<16x1xf32>
      tpu.vector_store %arg6[%c0_20, %c0_21], %32 {strides = array<i32>} : memref<16x1xf32, #tpu.memory_space<vmem>>, vector<16x1xf32>,
      %cst_22 = arith.constant 0.000000e+00 : f32
      %34 = vector.broadcast %cst_22 : f32 to vector<16x1xf32>
      %c0_23 = arith.constant 0 : index
      %c0_24 = arith.constant 0 : index
      %35 = vector.load %arg7[%c0_23, %c0_24] : memref<16x1xf32, #tpu.memory_space<vmem>>, vector<16x1xf32>
      tpu.vector_store %arg7[%c0_23, %c0_24], %34 {strides = array<i32>} : memref<16x1xf32, #tpu.memory_space<vmem>>, vector<16x1xf32>,
    } else {
    }
    %c0 = arith.constant 0 : index
    %c0_1 = arith.constant 0 : index
    %3 = vector.load %arg2[%c0, %c0_1] : memref<16x128xbf16, #tpu.memory_space<vmem>>, vector<16x128xbf16>
    %c0_2 = arith.constant 0 : index
    %c0_3 = arith.constant 0 : index
    %4 = vector.load %arg3[%c0_2, %c0_3] : memref<128x512xbf16, #tpu.memory_space<vmem>>, vector<128x512xbf16>
    %cst = arith.constant dense<0.000000e+00> : vector<16x512xf32>
    %5 = tpu.matmul %3, %4, %cst {dimension_numbers = #tpu.dot_dimension_numbers<[1], [0], [0], [1], [0, 0, 1, 1], [], []>} : vector<16x128xbf16>, vector<128x512xbf16>, vector<16x512xf32> -> vector<16x512xf32>
    %c0_4 = arith.constant 0 : index
    %c0_5 = arith.constant 0 : index
    %6 = vector.load %arg4[%c0_4, %c0_5] : memref<1x512xf32, #tpu.memory_space<vmem>>, vector<1x512xf32>
    %7 = vector.broadcast %6 : vector<1x512xf32> to vector<16x512xf32>
    %8 = arith.addf %5, %7 : vector<16x512xf32>
    %c0_6 = arith.constant 0 : index
    %c0_7 = arith.constant 0 : index
    %9 = vector.load %arg6[%c0_6, %c0_7] : memref<16x1xf32, #tpu.memory_space<vmem>>, vector<16x1xf32>
    %cst_8 = arith.constant dense<0xFF800000> : vector<16xf32>
    %10 = vector.multi_reduction <maximumf>, %8, %cst_8 [1] : vector<16x512xf32> to vector<16xf32>
    %11 = vector.shape_cast %10 : vector<16xf32> to vector<16x1xf32>
    %12 = arith.maximumf %9, %11 : vector<16x1xf32>
    %c0_9 = arith.constant 0 : index
    %c0_10 = arith.constant 0 : index
    %13 = vector.load %arg7[%c0_9, %c0_10] : memref<16x1xf32, #tpu.memory_space<vmem>>, vector<16x1xf32>
    %14 = arith.subf %9, %12 : vector<16x1xf32>
    %15 = math.exp %14 : vector<16x1xf32>
    %16 = arith.mulf %13, %15 : vector<16x1xf32>
    %17 = vector.broadcast %12 : vector<16x1xf32> to vector<16x512xf32>
    %18 = arith.subf %8, %17 : vector<16x512xf32>
    %19 = math.exp %18 : vector<16x512xf32>
    %cst_11 = arith.constant dense<0.000000e+00> : vector<16xf32>
    %20 = vector.multi_reduction <add>, %19, %cst_11 [1] : vector<16x512xf32> to vector<16xf32>
    %21 = vector.shape_cast %20 : vector<16xf32> to vector<16x1xf32>
    %22 = arith.addf %16, %21 : vector<16x1xf32>
    %c0_12 = arith.constant 0 : index
    %c0_13 = arith.constant 0 : index
    %23 = vector.load %arg7[%c0_12, %c0_13] : memref<16x1xf32, #tpu.memory_space<vmem>>, vector<16x1xf32>
    tpu.vector_store %arg7[%c0_12, %c0_13], %22 {strides = array<i32>} : memref<16x1xf32, #tpu.memory_space<vmem>>, vector<16x1xf32>,
    %c0_14 = arith.constant 0 : index
    %c0_15 = arith.constant 0 : index
    %24 = vector.load %arg6[%c0_14, %c0_15] : memref<16x1xf32, #tpu.memory_space<vmem>>, vector<16x1xf32>
    tpu.vector_store %arg6[%c0_14, %c0_15], %12 {strides = array<i32>} : memref<16x1xf32, #tpu.memory_space<vmem>>, vector<16x1xf32>,
    %c512_i32 = arith.constant 512 : i32
    %25 = arith.muli %arg1, %c512_i32 : i32
    %26 = tpu.assume_multiple %25, 512 : i32
    %c0_16 = arith.constant 0 : index
    %27 = arith.index_cast %26 : i32 to index
    %28 = vector.load %arg5[%c0_16, %27] : memref<16x512xf32, #tpu.memory_space<vmem>>, vector<16x512xf32>
    tpu.vector_store %arg5[%c0_16, %27], %8 {strides = array<i32>} : memref<16x512xf32, #tpu.memory_space<vmem>>, vector<16x512xf32>,
    %c0_i32_17 = arith.constant 0 : i32
    %29 = arith.cmpi eq, %arg1, %c0_i32_17 : i32
    %30 = arith.extui %29 : i1 to i32
    %c0_i32_18 = arith.constant 0 : i32
    %31 = arith.cmpi ne, %30, %c0_i32_18 : i32
    scf.if %31 {
      %c0_19 = arith.constant 0 : index
      %c0_20 = arith.constant 0 : index
      %32 = vector.load %arg6[%c0_19, %c0_20] : memref<16x1xf32, #tpu.memory_space<vmem>>, vector<16x1xf32>
      %c0_21 = arith.constant 0 : index
      %c0_22 = arith.constant 0 : index
      %33 = vector.load %arg7[%c0_21, %c0_22] : memref<16x1xf32, #tpu.memory_space<vmem>>, vector<16x1xf32>
      %34 = math.log %33 : vector<16x1xf32>
      %35 = arith.addf %32, %34 : vector<16x1xf32>
      %c0_23 = arith.constant 0 : index
      %c0_24 = arith.constant 0 : index
      %36 = vector.load %arg5[%c0_23, %c0_24] : memref<16x512xf32, #tpu.memory_space<vmem>>, vector<16x512xf32>
      %37 = vector.broadcast %35 : vector<16x1xf32> to vector<16x512xf32>
      %38 = arith.subf %36, %37 : vector<16x512xf32>
      %c0_25 = arith.constant 0 : index
      %c0_26 = arith.constant 0 : index
      %39 = vector.load %arg5[%c0_25, %c0_26] : memref<16x512xf32, #tpu.memory_space<vmem>>, vector<16x512xf32>
      tpu.vector_store %arg5[%c0_25, %c0_26], %38 {strides = array<i32>} : memref<16x512xf32, #tpu.memory_space<vmem>>, vector<16x512xf32>,
    } else {
    }
    return
  }
  func.func @transform_0(%arg0: i32, %arg1: i32) -> (i32, i32) {
    %c0_i32 = arith.constant 0 : i32
    %c0_i32_0 = arith.constant 0 : i32
    return %arg0, %c0_i32 : i32, i32
  }
  func.func @transform_1(%arg0: i32, %arg1: i32) -> (i32, i32) {
    %c0_i32 = arith.constant 0 : i32
    %c0_i32_0 = arith.constant 0 : i32
    return %c0_i32, %arg1 : i32, i32
  }
  func.func @transform_2(%arg0: i32, %arg1: i32) -> (i32, i32) {
    %c0_i32 = arith.constant 0 : i32
    %c0_i32_0 = arith.constant 0 : i32
    return %c0_i32, %arg1 : i32, i32
  }
  func.func @transform_3(%arg0: i32, %arg1: i32) -> (i32, i32) {
    %c0_i32 = arith.constant 0 : i32
    %c0_i32_0 = arith.constant 0 : i32
    return %arg0, %c0_i32 : i32, i32
  }
}

</mosaic_0001>

<llo_original>
// kernel: tpu_custom_call.1
$region0: #{tpu_custom_call.1}
  #allocation0 [shape = 'u32[]', space=smem, size = 0x4, offset = 0x4, fixed_abs, tag = 'smem constant byte address 0x4 - core index']
  #allocation1 [shape = 'u32[72,128]{1,0:T(1,128)}', space=vmem, size = 0x9000, scoped, tag = 'internal scratch']
  #allocation2 [shape = 'f32[16,1]{1,0:T(8,128)}', space=vmem, size = 0x2000, scoped, tag = 'scratch operand']
  #allocation3 [shape = 'f32[16,1]{1,0:T(8,128)}', space=vmem, size = 0x2000, scoped, tag = 'scratch operand']
  %s0 = inlined_call_operand.hbm [shape: bf16[16,128], index: 0, kind: input, shape index: {}]
  %s1 = inlined_call_operand.hbm [shape: bf16[128,512], index: 1, kind: input, shape index: {}]
  %s2 = inlined_call_operand.hbm [shape: f32[1,512], index: 2, kind: input, shape index: {}]
  %s3 = inlined_call_operand.hbm [shape: f32[16,512], index: 3, kind: output, shape index: {}]
  %s4 = sld [smem:[#allocation0]]
  $region42: #{tpu_custom_call.1} parent=0
    _
  %s6 = ssub.s32 1, %s4
  %s7 = scalar_select 0, %s6, %s4
  $region1: #{tpu_custom_call.1} parent=0
    #allocation4 [shape = 'u8[4096]{0}', space=vmem, size = 0x1000, scoped, tag = 'input window, operand 0, single buffered']
    #allocation5 [shape = 's32[1]{0}', space=sflag, size = 0x4, scoped, tag = 'scoped memory for tpu_custom_call.1']
    #allocation6 [shape = 's32[1]{0}', space=sflag, size = 0x4, scoped, tag = 'scoped memory for tpu_custom_call.1']
    #allocation7 [shape = 'u8[131072]{0}', space=vmem, size = 0x20000, scoped, tag = 'input window, operand 1, single buffered']
    #allocation8 [shape = 's32[1]{0}', space=sflag, size = 0x4, scoped, tag = 'scoped memory for tpu_custom_call.1']
    #allocation9 [shape = 'u8[2048]{0}', space=vmem, size = 0x800, scoped, tag = 'input window, operand 2, single buffered']
    #allocation10 [shape = 'u8[32768]{0}', space=vmem, size = 0x8000, scoped, tag = 'output window, operand 0, single buffered']
    %8 = vsyncpa [#allocation5], 0
    %9 = vsyncpa [#allocation8], 0
    %10 = vsyncpa [#allocation6], 0
    // Predicated region
    $region2: #{tpu_custom_call.1} parent=1 // pred_check
      _
    $region3: #{tpu_custom_call.1} parent=1 // pred_check_branch
      %12 = sbr.rel (0) target = $region5
    $region4: #{tpu_custom_call.1} parent=1 // pred_region
      %14 = vsyncadd [#allocation5], 0
      %s15 = sshll.u32 %s0, 4
      %s16 = int_to_ptr.hbm [resolvable:$true] %s15
      %s17 = sshll.u32 [#allocation4], 4
      %s18 = int_to_ptr.vmem [resolvable:$true] %s17
      %23 = dma.hbm_to_vmem [thread:$0]  %s16, 128, %s18, [#allocation5], 64, 64, 4
    $region5: #{tpu_custom_call.1} parent=1 // pred_fallthru
      _
    // Predicated region
    $region6: #{tpu_custom_call.1} parent=1 // pred_check
      _
    $region7: #{tpu_custom_call.1} parent=1 // pred_check_branch
      %25 = sbr.rel (0) target = $region9
    $region8: #{tpu_custom_call.1} parent=1 // pred_region
      %27 = vsyncadd [#allocation8], 0
      %s28 = sshll.u32 %s1, 4
      %s29 = int_to_ptr.hbm [resolvable:$true] %s28
      %s30 = sshll.u32 [#allocation7], 4
      %s31 = int_to_ptr.vmem [resolvable:$true] %s30
      %36 = dma.hbm_to_vmem [thread:$0]  %s29, 4096, %s31, [#allocation8], 256, 256, 16
    $region9: #{tpu_custom_call.1} parent=1 // pred_fallthru
      _
    // Predicated region
    $region10: #{tpu_custom_call.1} parent=1 // pred_check
      _
    $region11: #{tpu_custom_call.1} parent=1 // pred_check_branch
      %38 = sbr.rel (0) target = $region13
    $region12: #{tpu_custom_call.1} parent=1 // pred_region
      %40 = vsyncadd [#allocation8], 0
      %s42 = sshll.u32 %s2, 4
      %s43 = int_to_ptr.hbm [resolvable:$true] %s42
      %s44 = sshll.u32 [#allocation9], 4
      %s45 = int_to_ptr.vmem [resolvable:$true] %s44
      %47 = dma.hbm_to_vmem [thread:$0]  %s43, 64, %s45, [#allocation8]
    $region13: #{tpu_custom_call.1} parent=1 // pred_fallthru
      _
    // Predicated region
    $region14: #{tpu_custom_call.1} parent=1 // pred_check
      _
    $region15: #{tpu_custom_call.1} parent=1 // pred_check_branch
      %49 = sbr.rel (0) target = $region17
    $region16: #{tpu_custom_call.1} parent=1 // pred_region
      %51 = dma.done [#allocation5], 128
    $region17: #{tpu_custom_call.1} parent=1 // pred_fallthru
      _
    // Predicated region
    $region18: #{tpu_custom_call.1} parent=1 // pred_check
      _
    $region19: #{tpu_custom_call.1} parent=1 // pred_check_branch
      %53 = sbr.rel (0) target = $region21
    $region20: #{tpu_custom_call.1} parent=1 // pred_region
      %55 = dma.done [#allocation8], 4096
    $region21: #{tpu_custom_call.1} parent=1 // pred_fallthru
      _
    // Predicated region
    $region22: #{tpu_custom_call.1} parent=1 // pred_check
      _
    $region23: #{tpu_custom_call.1} parent=1 // pred_check_branch
      %57 = sbr.rel (0) target = $region25
    $region24: #{tpu_custom_call.1} parent=1 // pred_region
      %59 = dma.done [#allocation8], 64
    $region25: #{tpu_custom_call.1} parent=1 // pred_fallthru
      _
    %p60 = scmp.eq.s32.totalorder 0, 0
    // Predicated region
    $region26: #{tpu_custom_call.1} parent=1 // pred_check
      %p61 = pneg %p60
    $region27: #{tpu_custom_call.1} parent=1 // pred_check_branch
      %63 = sbr.rel (%p61) target = $region29
    $region28: #{tpu_custom_call.1} parent=1 // pred_region
      %vm64 = vcmask 7168
      %65 = vst.msk [vmem:[#allocation2] sm:$0xff] %vm64, -1e+30
      %66 = vst.msk [vmem:[#allocation2 + $0x8] sm:$0xff] %vm64, -1e+30
      %67 = vst.msk [vmem:[#allocation3] sm:$0xff] %vm64, 0.0
      %68 = vst.msk [vmem:[#allocation3 + $0x8] sm:$0xff] %vm64, 0.0
    $region29: #{tpu_custom_call.1} parent=1 // pred_fallthru
      _
    %v69 = vld [vmem:[#allocation4] sm:$0xf]
    %v70 = vld [vmem:[#allocation4 + $0x4] sm:$0xf]
    %v71 = vld [vmem:[#allocation7] sm:$0xff]
    %v72 = vld [vmem:[#allocation7 + $0x8] sm:$0xff]
    %v73 = vld [vmem:[#allocation7 + $0x10] sm:$0xff]
    %v74 = vld [vmem:[#allocation7 + $0x18] sm:$0xff]
    %v75 = vld [vmem:[#allocation7 + $0x20] sm:$0xff]
    %v76 = vld [vmem:[#allocation7 + $0x28] sm:$0xff]
    %v77 = vld [vmem:[#allocation7 + $0x30] sm:$0xff]
    %v78 = vld [vmem:[#allocation7 + $0x38] sm:$0xff]
    %v79 = vld [vmem:[#allocation7 + $0x40] sm:$0xff]
    %v80 = vld [vmem:[#allocation7 + $0x48] sm:$0xff]
    %v81 = vld [vmem:[#allocation7 + $0x50] sm:$0xff]
    %v82 = vld [vmem:[#allocation7 + $0x58] sm:$0xff]
    %v83 = vld [vmem:[#allocation7 + $0x60] sm:$0xff]
    %v84 = vld [vmem:[#allocation7 + $0x68] sm:$0xff]
    %v85 = vld [vmem:[#allocation7 + $0x70] sm:$0xff]
    %v86 = vld [vmem:[#allocation7 + $0x78] sm:$0xff]
    %v87 = vld [vmem:[#allocation7 + $0x80] sm:$0xff]
    %v88 = vld [vmem:[#allocation7 + $0x88] sm:$0xff]
    %v89 = vld [vmem:[#allocation7 + $0x90] sm:$0xff]
    %v90 = vld [vmem:[#allocation7 + $0x98] sm:$0xff]
    %v91 = vld [vmem:[#allocation7 + $0xa0] sm:$0xff]
    %v92 = vld [vmem:[#allocation7 + $0xa8] sm:$0xff]
    %v93 = vld [vmem:[#allocation7 + $0xb0] sm:$0xff]
    %v94 = vld [vmem:[#allocation7 + $0xb8] sm:$0xff]
    %v95 = vld [vmem:[#allocation7 + $0xc0] sm:$0xff]
    %v96 = vld [vmem:[#allocation7 + $0xc8] sm:$0xff]
    %v97 = vld [vmem:[#allocation7 + $0xd0] sm:$0xff]
    %v98 = vld [vmem:[#allocation7 + $0xd8] sm:$0xff]
    %v99 = vld [vmem:[#allocation7 + $0xe0] sm:$0xff]
    %v100 = vld [vmem:[#allocation7 + $0xe8] sm:$0xff]
    %v101 = vld [vmem:[#allocation7 + $0xf0] sm:$0xff]
    %v102 = vld [vmem:[#allocation7 + $0xf8] sm:$0xff]
    %v103 = vld [vmem:[#allocation9] sm:$0xf]
    %v105 = vperm.slane %v103, 0
    %v106 = vperm.slane %v103, 1
    %v107 = vperm.slane %v103, 2
    %v108 = vperm.slane %v103, 3
    %v115 = vunpack.c.l.b16 %v69
    %v116 = vunpack.c.l.b16 %v70
    %v117 = vpack.c.b16 %v116, %v115
    %v151 = vunpack.c.l.b16 %v71
    %v152 = vunpack.c.h.b16 %v71
    %v153 = vunpack.c.l.b16 %v72
    %v154 = vunpack.c.h.b16 %v72
    %v155 = vunpack.c.l.b16 %v73
    %v156 = vunpack.c.h.b16 %v73
    %v157 = vunpack.c.l.b16 %v74
    %v158 = vunpack.c.h.b16 %v74
    %v159 = vunpack.c.l.b16 %v75
    %v160 = vunpack.c.h.b16 %v75
    %v161 = vunpack.c.l.b16 %v76
    %v162 = vunpack.c.h.b16 %v76
    %v163 = vunpack.c.l.b16 %v77
    %v164 = vunpack.c.h.b16 %v77
    %v165 = vunpack.c.l.b16 %v78
    %v166 = vunpack.c.h.b16 %v78
    %v167 = vunpack.c.l.b16 %v79
    %v168 = vunpack.c.h.b16 %v79
    %v169 = vunpack.c.l.b16 %v80
    %v170 = vunpack.c.h.b16 %v80
    %v171 = vunpack.c.l.b16 %v81
    %v172 = vunpack.c.h.b16 %v81
    %v173 = vunpack.c.l.b16 %v82
    %v174 = vunpack.c.h.b16 %v82
    %v175 = vunpack.c.l.b16 %v83
    %v176 = vunpack.c.h.b16 %v83
    %v177 = vunpack.c.l.b16 %v84
    %v178 = vunpack.c.h.b16 %v84
    %v179 = vunpack.c.l.b16 %v85
    %v180 = vunpack.c.h.b16 %v85
    %v181 = vunpack.c.l.b16 %v86
    %v182 = vunpack.c.h.b16 %v86
    %v183 = vunpack.c.l.b16 %v87
    %v184 = vunpack.c.h.b16 %v87
    %v185 = vunpack.c.l.b16 %v88
    %v186 = vunpack.c.h.b16 %v88
    %v187 = vunpack.c.l.b16 %v89
    %v188 = vunpack.c.h.b16 %v89
    %v189 = vunpack.c.l.b16 %v90
    %v190 = vunpack.c.h.b16 %v90
    %v191 = vunpack.c.l.b16 %v91
    %v192 = vunpack.c.h.b16 %v91
    %v193 = vunpack.c.l.b16 %v92
    %v194 = vunpack.c.h.b16 %v92
    %v195 = vunpack.c.l.b16 %v93
    %v196 = vunpack.c.h.b16 %v93
    %v197 = vunpack.c.l.b16 %v94
    %v198 = vunpack.c.h.b16 %v94
    %v199 = vunpack.c.l.b16 %v95
    %v200 = vunpack.c.h.b16 %v95
    %v201 = vunpack.c.l.b16 %v96
    %v202 = vunpack.c.h.b16 %v96
    %v203 = vunpack.c.l.b16 %v97
    %v204 = vunpack.c.h.b16 %v97
    %v205 = vunpack.c.l.b16 %v98
    %v206 = vunpack.c.h.b16 %v98
    %v207 = vunpack.c.l.b16 %v99
    %v208 = vunpack.c.h.b16 %v99
    %v209 = vunpack.c.l.b16 %v100
    %v210 = vunpack.c.h.b16 %v100
    %v211 = vunpack.c.l.b16 %v101
    %v212 = vunpack.c.h.b16 %v101
    %v213 = vunpack.c.l.b16 %v102
    %v214 = vunpack.c.h.b16 %v102
    %v215 = vpack.c.b16 %v155, %v151
    %v216 = vpack.c.b16 %v156, %v152
    %v217 = vpack.c.b16 %v157, %v153
    %v218 = vpack.c.b16 %v158, %v154
    %v219 = vpack.c.b16 %v163, %v159
    %v220 = vpack.c.b16 %v164, %v160
    %v221 = vpack.c.b16 %v165, %v161
    %v222 = vpack.c.b16 %v166, %v162
    %v223 = vpack.c.b16 %v171, %v167
    %v224 = vpack.c.b16 %v172, %v168
    %v225 = vpack.c.b16 %v173, %v169
    %v226 = vpack.c.b16 %v174, %v170
    %v227 = vpack.c.b16 %v179, %v175
    %v228 = vpack.c.b16 %v180, %v176
    %v229 = vpack.c.b16 %v181, %v177
    %v230 = vpack.c.b16 %v182, %v178
    %v231 = vpack.c.b16 %v187, %v183
    %v232 = vpack.c.b16 %v188, %v184
    %v233 = vpack.c.b16 %v189, %v185
    %v234 = vpack.c.b16 %v190, %v186
    %v235 = vpack.c.b16 %v195, %v191
    %v236 = vpack.c.b16 %v196, %v192
    %v237 = vpack.c.b16 %v197, %v193
    %v238 = vpack.c.b16 %v198, %v194
    %v239 = vpack.c.b16 %v203, %v199
    %v240 = vpack.c.b16 %v204, %v200
    %v241 = vpack.c.b16 %v205, %v201
    %v242 = vpack.c.b16 %v206, %v202
    %v243 = vpack.c.b16 %v211, %v207
    %v244 = vpack.c.b16 %v212, %v208
    %v245 = vpack.c.b16 %v213, %v209
    %v246 = vpack.c.b16 %v214, %v210
    %279 = vmatpush.bf16.msra.mxu0 %v243
    %280 = vmatpush.bf16.msra.mxu0 %v239
    %281 = vmatpush.bf16.msra.mxu0 %v235
    %282 = vmatpush.bf16.msra.mxu0 %v231
    %283 = vmatpush.bf16.msra.mxu0 %v227
    %284 = vmatpush.bf16.msra.mxu0 %v223
    %285 = vmatpush.bf16.msra.mxu0 %v219
    %286 = vmatpush.bf16.msra.mxu0 %v215
    %287 = vmatmul.bf16.gmra.mxu0 %v117
    %v288 = vpop.f32.mrf.mxu0
    %v289 = vadd.f32 %v105, %v288
    %v290 = vpop.f32.mrf.mxu0
    %v291 = vadd.f32 %v105, %v290
    %292 = vdwg.mxu0
    %293 = vmatpush.bf16.msra.mxu0 %v244
    %294 = vmatpush.bf16.msra.mxu0 %v240
    %295 = vmatpush.bf16.msra.mxu0 %v236
    %296 = vmatpush.bf16.msra.mxu0 %v232
    %297 = vmatpush.bf16.msra.mxu0 %v228
    %298 = vmatpush.bf16.msra.mxu0 %v224
    %299 = vmatpush.bf16.msra.mxu0 %v220
    %300 = vmatpush.bf16.msra.mxu0 %v216
    %301 = vmatmul.bf16.gmra.mxu0 %v117
    %v302 = vpop.f32.mrf.mxu0
    %v303 = vadd.f32 %v106, %v302
    %v304 = vpop.f32.mrf.mxu0
    %v305 = vadd.f32 %v106, %v304
    %306 = vdwg.mxu0
    %307 = vmatpush.bf16.msra.mxu0 %v245
    %308 = vmatpush.bf16.msra.mxu0 %v241
    %309 = vmatpush.bf16.msra.mxu0 %v237
    %310 = vmatpush.bf16.msra.mxu0 %v233
    %311 = vmatpush.bf16.msra.mxu0 %v229
    %312 = vmatpush.bf16.msra.mxu0 %v225
    %313 = vmatpush.bf16.msra.mxu0 %v221
    %314 = vmatpush.bf16.msra.mxu0 %v217
    %315 = vmatmul.bf16.gmra.mxu0 %v117
    %v316 = vpop.f32.mrf.mxu0
    %v317 = vadd.f32 %v107, %v316
    %v318 = vpop.f32.mrf.mxu0
    %v319 = vadd.f32 %v107, %v318
    %320 = vdwg.mxu0
    %321 = vmatpush.bf16.msra.mxu0 %v246
    %322 = vmatpush.bf16.msra.mxu0 %v242
    %323 = vmatpush.bf16.msra.mxu0 %v238
    %324 = vmatpush.bf16.msra.mxu0 %v234
    %325 = vmatpush.bf16.msra.mxu0 %v230
    %326 = vmatpush.bf16.msra.mxu0 %v226
    %327 = vmatpush.bf16.msra.mxu0 %v222
    %328 = vmatpush.bf16.msra.mxu0 %v218
    %329 = vmatmul.bf16.gmra.mxu0 %v117
    %v330 = vpop.f32.mrf.mxu0
    %v331 = vadd.f32 %v108, %v330
    %v332 = vpop.f32.mrf.mxu0
    %v333 = vadd.f32 %v108, %v332
    %334 = vdwg.mxu0
    %v335 = vld [vmem:[#allocation2] sm:$0xff]
    %v336 = vld [vmem:[#allocation2 + $0x8] sm:$0xff]
    %v337 = vmax.f32 %v289, %v317
    %v338 = vmax.f32 %v303, %v331
    %v339 = vmax.f32 %v337, %v338
    %340 = vmax.xlane.f32.xlu0 %v339
    %v341 = vpop.xlane.xlu0 %340
    %v342 = vmax.f32 %v291, %v319
    %v343 = vmax.f32 %v305, %v333
    %v344 = vmax.f32 %v342, %v343
    %345 = vmax.xlane.f32.xlu0 %v344
    %v346 = vpop.xlane.xlu0 %345
    %v347 = vmax.f32 %v335, %v341
    %v348 = vmax.f32 %v336, %v346
    %v349 = vld [vmem:[#allocation3] sm:$0xff]
    %v350 = vld [vmem:[#allocation3 + $0x8] sm:$0xff]
    %v351 = vsub.f32 %v335, %v347
    %v352 = vsub.f32 %v336, %v348
    %v353 = vmul.f32 %v351, 1.442695
    %v354 = vpow.pop %v353
    %v355 = vmul.f32 %v352, 1.442695
    %v356 = vpow.pop %v355
    %v357 = vmul.f32 %v349, %v354
    %v358 = vmul.f32 %v350, %v356
    %360 = vset.pattern.permute.xlu0 0
    %361 = vperm.xlu0 %360, %v347
    %v362 = vpop.permute.xlu0 %361
    %365 = vset.pattern.permute.xlu0 0
    %366 = vperm.xlu0 %365, %v348
    %v367 = vpop.permute.xlu0 %366
    %v369 = vsub.f32 %v289, %v362
    %v370 = vsub.f32 %v303, %v362
    %v371 = vsub.f32 %v317, %v362
    %v372 = vsub.f32 %v331, %v362
    %v373 = vsub.f32 %v291, %v367
    %v374 = vsub.f32 %v305, %v367
    %v375 = vsub.f32 %v319, %v367
    %v376 = vsub.f32 %v333, %v367
    %v377 = vmul.f32 %v369, 1.442695
    %v378 = vpow.pop %v377
    %v379 = vmul.f32 %v370, 1.442695
    %v380 = vpow.pop %v379
    %v381 = vmul.f32 %v371, 1.442695
    %v382 = vpow.pop %v381
    %v383 = vmul.f32 %v372, 1.442695
    %v384 = vpow.pop %v383
    %v385 = vmul.f32 %v373, 1.442695
    %v386 = vpow.pop %v385
    %v387 = vmul.f32 %v374, 1.442695
    %v388 = vpow.pop %v387
    %v389 = vmul.f32 %v375, 1.442695
    %v390 = vpow.pop %v389
    %v391 = vmul.f32 %v376, 1.442695
    %v392 = vpow.pop %v391
    %v393 = vadd.f32 %v378, %v380
    %v394 = vadd.f32 %v393, %v382
    %v395 = vadd.f32 %v394, %v384
    %396 = vadd.xlane.f32.xlu0 %v395
    %v397 = vpop.xlane.xlu0 %396
    %v398 = vadd.f32 %v386, %v388
    %v399 = vadd.f32 %v398, %v390
    %v400 = vadd.f32 %v399, %v392
    %401 = vadd.xlane.f32.xlu0 %v400
    %v402 = vpop.xlane.xlu0 %401
    %v403 = vadd.f32 %v357, %v397
    %v404 = vadd.f32 %v358, %v402
    %vm405 = vcmask 7168
    %406 = vst.msk [vmem:[#allocation3] sm:$0xff] %vm405, %v403
    %407 = vst.msk [vmem:[#allocation3 + $0x8] sm:$0xff] %vm405, %v404
    %408 = vst.msk [vmem:[#allocation2] sm:$0xff] %vm405, %v347
    %409 = vst.msk [vmem:[#allocation2 + $0x8] sm:$0xff] %vm405, %v348
    %s410 = smul.u32 0, 512
    %s411 = sshra.s32 %s410, 7
    %s412 = sand.u32 %s410, 127
    %s413 = smul.addr %s411, 8
    %s414 = scalar_lea.vmem [#allocation10], %s413
    %415 = vst [vmem:[%s414] sm:$0xff] %v289
    %416 = vst [vmem:[%s414 + $0x8] sm:$0xff] %v303
    %417 = vst [vmem:[%s414 + $0x10] sm:$0xff] %v317
    %418 = vst [vmem:[%s414 + $0x18] sm:$0xff] %v331
    %419 = vst [vmem:[%s414 + $0x20] sm:$0xff] %v291
    %420 = vst [vmem:[%s414 + $0x28] sm:$0xff] %v305
    %421 = vst [vmem:[%s414 + $0x30] sm:$0xff] %v319
    %422 = vst [vmem:[%s414 + $0x38] sm:$0xff] %v333
    // Predicated region
    $region30: #{tpu_custom_call.1} parent=1 // pred_check
      %p423 = pneg %p60
    $region31: #{tpu_custom_call.1} parent=1 // pred_check_branch
      %425 = sbr.rel (%p423) target = $region33
    $region32: #{tpu_custom_call.1} parent=1 // pred_region
      %v426 = vld [vmem:[#allocation2] sm:$0xff]
      %v427 = vld [vmem:[#allocation2 + $0x8] sm:$0xff]
      %v428 = vld [vmem:[#allocation3] sm:$0xff]
      %v429 = vld [vmem:[#allocation3 + $0x8] sm:$0xff]
      %v430 = vlog2.pop %v428
      %v431 = vmul.f32 %v430, 0.6931472
      %v432 = vlog2.pop %v429
      %v433 = vmul.f32 %v432, 0.6931472
      %v434 = vadd.f32 %v426, %v431
      %v435 = vadd.f32 %v427, %v433
      %v436 = vld [vmem:[#allocation10] sm:$0xff]
      %v437 = vld [vmem:[#allocation10 + $0x8] sm:$0xff]
      %v438 = vld [vmem:[#allocation10 + $0x10] sm:$0xff]
      %v439 = vld [vmem:[#allocation10 + $0x18] sm:$0xff]
      %v440 = vld [vmem:[#allocation10 + $0x20] sm:$0xff]
      %v441 = vld [vmem:[#allocation10 + $0x28] sm:$0xff]
      %v442 = vld [vmem:[#allocation10 + $0x30] sm:$0xff]
      %v443 = vld [vmem:[#allocation10 + $0x38] sm:$0xff]
      %445 = vset.pattern.permute.xlu0 0
      %446 = vperm.xlu0 %445, %v434
      %v447 = vpop.permute.xlu0 %446
      %450 = vset.pattern.permute.xlu0 0
      %451 = vperm.xlu0 %450, %v435
      %v452 = vpop.permute.xlu0 %451
      %v454 = vsub.f32 %v436, %v447
      %v455 = vsub.f32 %v437, %v447
      %v456 = vsub.f32 %v438, %v447
      %v457 = vsub.f32 %v439, %v447
      %v458 = vsub.f32 %v440, %v452
      %v459 = vsub.f32 %v441, %v452
      %v460 = vsub.f32 %v442, %v452
      %v461 = vsub.f32 %v443, %v452
      %462 = vst [vmem:[#allocation10] sm:$0xff] %v454
      %463 = vst [vmem:[#allocation10 + $0x8] sm:$0xff] %v455
      %464 = vst [vmem:[#allocation10 + $0x10] sm:$0xff] %v456
      %465 = vst [vmem:[#allocation10 + $0x18] sm:$0xff] %v457
      %466 = vst [vmem:[#allocation10 + $0x20] sm:$0xff] %v458
      %467 = vst [vmem:[#allocation10 + $0x28] sm:$0xff] %v459
      %468 = vst [vmem:[#allocation10 + $0x30] sm:$0xff] %v460
      %469 = vst [vmem:[#allocation10 + $0x38] sm:$0xff] %v461
    $region33: #{tpu_custom_call.1} parent=1 // pred_fallthru
      _
    // Predicated region
    $region34: #{tpu_custom_call.1} parent=1 // pred_check
      _
    $region35: #{tpu_custom_call.1} parent=1 // pred_check_branch
      %471 = sbr.rel (0) target = $region37
    $region36: #{tpu_custom_call.1} parent=1 // pred_region
      %473 = vsyncadd [#allocation6], 0
      %s474 = sshll.u32 [#allocation10], 4
      %s475 = int_to_ptr.vmem [resolvable:$true] %s474
      %s476 = sshll.u32 %s3, 4
      %s477 = int_to_ptr.hbm [resolvable:$true] %s476
      %482 = dma.vmem_to_hbm [thread:$0]  %s475, 1024, %s477, [#allocation6], 512, 512, 32
    $region37: #{tpu_custom_call.1} parent=1 // pred_fallthru
      _
    // Predicated region
    $region38: #{tpu_custom_call.1} parent=1 // pred_check
      _
    $region39: #{tpu_custom_call.1} parent=1 // pred_check_branch
      %484 = sbr.rel (0) target = $region41
    $region40: #{tpu_custom_call.1} parent=1 // pred_region
      %486 = dma.done [#allocation6], 1024
    $region41: #{tpu_custom_call.1} parent=1 // pred_fallthru
      _
    %487 = vsyncpa [#allocation5], 1
    %488 = vsyncpa [#allocation8], 1
    %489 = vsyncpa [#allocation6], 1

</llo_original>
